<compile_context>
chip_gen: v6e
topology: v6e:2x2x1
jax: 0.10.0
libtpu: 0.0.40
codegen_flags: <defaults>
</compile_context>

<pallas_src>
import numpy as np
import jax
import jax.numpy as jnp
from jax.experimental import pallas as pl
from jax.experimental.pallas import tpu as pltpu

WIN = 30            # `win` in the PyTorch script
F1 = 128            # filter1_size
F2 = 32             # filter2_size
K = 2               # kernel_size
POOL = 2            # pool_size
N_OUT = 8           # stands in for len(test_input)
DIM1 = int(0.5 * (0.5 * (WIN - 1) - 1)) * F2   # = 192, matches self.dim1

L1 = WIN - K + 1          # 29  (after conv1)
P1 = L1 // POOL           # 14  (after pool1)
L2 = P1 - K + 1           # 13  (after conv2)
P2 = L2 // POOL           # 6   (after pool2)

N_PAD = 128               # lane-dense padded linear-output width
ROWS2 = 16                # conv2-position rows per batch, padded 13 -> 16
TB = 256                  # batch tile (rows per grid step); ~10-15 MiB VMEM/tile


def cnn_kernel(xt_ref, ws_ref, w2_ref, wl_ref, out_ref):
    tb = out_ref.shape[0]

    xt = xt_ref[...]                 # (tb, 8, 8) f32 : xt[b, m, d] = x[b, 4m+d]
    ws = ws_ref[...]                 # (8, 128)  f32 : rows w1[0], w1[1], b1, b2, bl
    w2 = w2_ref[...]                 # (256, 32) bf16: row k*128+ci = conv2.w[:, ci, k]
    wl = wl_ref[...]                 # (256,128) bf16: row j*32+c  = lin1.w[:, c*6+j]

    w1a = ws[None, 0:1, :]           # (1, 1, 128)
    w1b = ws[None, 1:2, :]
    b1 = ws[None, 2:3, :]
    b2 = ws[3:4, 0:F2]               # (1, 32)
    bl = ws[4:5, :]                  # (1, 128)

    # ---- conv1 + ReLU + maxpool1 fused on the VPU --------------------------
    # p1e[m] = pool1[2m]   = relu(max(o1[4m],   o1[4m+1]))
    # p1o[m] = pool1[2m+1] = relu(max(o1[4m+2], o1[4m+3]))
    x0 = xt[:, 0:7, 0:1]
    # shared taps lane-broadcast once and reused (no per-multiply re-broadcast)
    x1 = jnp.broadcast_to(xt[:, 0:7, 1:2], (tb, 7, F1))
    x2 = jnp.broadcast_to(xt[:, 0:7, 2:3], (tb, 7, F1))
    x3 = jnp.broadcast_to(xt[:, 0:7, 3:4], (tb, 7, F1))
    x4 = xt[:, 0:7, 4:5]

    p1e = jnp.maximum(
        jnp.maximum(x0 * w1a + x1 * w1b, x1 * w1a + x2 * w1b) + b1, 0.0)
    p1o = jnp.maximum(
        jnp.maximum(x2 * w1a + x3 * w1b, x3 * w1a + x4 * w1b) + b1, 0.0)
    # each (tb, 7, 128) f32

    # ---- conv2 input rows, padded to 16 per batch (free, tile-aligned view) -
    # rows 0..5  -> conv2 even positions 2j : [pool1[2j]   | pool1[2j+1]]
    # rows 8..13 -> conv2 odd  positions 2j+1: [pool1[2j+1] | pool1[2j+2]]
    zrows = jnp.zeros((tb, 2, K * F1), jnp.float32)
    a = jnp.concatenate([
        jnp.concatenate([p1e[:, 0:P2, :], p1o[:, 0:P2, :]], axis=-1),
        zrows,
        jnp.concatenate([p1o[:, 0:P2, :], p1e[:, 1:P2 + 1, :]], axis=-1),
        zrows,
    ], axis=1)                                                # (tb, 16, 256)

    # ---- conv2 (+bias, ReLU): one K=256 bf16 MXU matmul, f32 accumulation ---
    a2 = a.astype(jnp.bfloat16).reshape(tb * ROWS2, K * F1)   # free view
    s = jnp.dot(a2, w2, preferred_element_type=jnp.float32)   # (tb*16, 32) f32
    s = jnp.maximum(s + b2, 0.0)
    s3 = s.reshape(tb, ROWS2, F2)                             # free view

    # ---- maxpool2 on the two aligned 8-sublane halves -----------------------
    p2 = jnp.maximum(s3[:, 0:8, :], s3[:, 8:16, :])           # (tb, 8, 32); rows 6,7 junk

    # ---- flatten + linear ---------------------------------------------------
    # flat[b, j*32 + c] = pool2[b, pos j, ch c]; wl rows >= 192 are zero so the
    # two junk pool rows contribute nothing.
    # TODO(synk): nn.Dropout(0.25) treated as eval-mode identity (no RNG mask).
    flat = p2.reshape(tb, 8 * F2).astype(jnp.bfloat16)        # (tb, 256)
    out_ref[...] = jnp.dot(flat, wl, preferred_element_type=jnp.float32) + bl


def prepare_params(params):
    """One-time conversion of PyTorch-layout params into kernel layouts."""
    c1w, c1b, c2w, c2b, lw, lb = params
    # small-weight slab: row0=w1[:,0,0], row1=w1[:,0,1], row2=b1, row3=b2, row4=bl
    ws = jnp.zeros((8, F1), jnp.float32)
    ws = ws.at[0, :].set(c1w[:, 0, 0])
    ws = ws.at[1, :].set(c1w[:, 0, 1])
    ws = ws.at[2, :].set(c1b)
    ws = ws.at[3, 0:F2].set(c2b)
    ws = ws.at[4, 0:N_OUT].set(lb)
    # conv2 weights: row k*128 + ci, column co  = torch conv2.weight[co, ci, k]
    w2 = jnp.transpose(c2w, (2, 1, 0)).reshape(K * F1, F2).astype(jnp.bfloat16)
    # linear weights: row j*32 + c = torch lin1.weight[:, c*6 + j]; rows padded
    # 192 -> 256 (zeros), cols padded 8 -> 128 (lane-dense output)
    wl = jnp.transpose(lw.reshape(N_OUT, F2, P2), (2, 1, 0)).reshape(DIM1, N_OUT)
    wl = jnp.pad(wl, ((0, 2 * F2), (0, N_PAD - N_OUT))).astype(jnp.bfloat16)
    return ws, w2, wl


@jax.jit
def cnn_forward(x, prepped):
    """x: (B, 1, WIN) float32 NCL.  prepped: output of prepare_params."""
    ws, w2, wl = prepped
    B = x.shape[0]
    tb = TB if B > TB else max(8, ((B + 7) // 8) * 8)   # sublane-dense batch tile
    nb = (B + tb - 1) // tb
    Bp = nb * tb

    # Single dense activation operand: xt[b, m, d] = x[b, 4m + d], d = 0..4.
    x2d = jnp.pad(x[:, 0, :].astype(jnp.float32), ((0, Bp - B), (0, 32 - WIN)))
    xr = x2d.reshape(Bp, 8, 4)                                       # taps d = 0..3
    tap4 = jnp.concatenate(
        [xr[:, 1:8, 0:1], jnp.zeros((Bp, 1, 1), jnp.float32)], axis=1)
    xt = jnp.concatenate(
        [xr, tap4, jnp.zeros((Bp, 8, 3), jnp.float32)], axis=-1)     # (Bp, 8, 8)

    out = pl.pallas_call(
        cnn_kernel,
        grid=(nb,),
        in_specs=[
            pl.BlockSpec((tb, 8, 8), lambda i: (i, 0, 0)),       # x taps (batch-tiled)
            pl.BlockSpec((8, F1), lambda i: (0, 0)),             # small-weight slab
            pl.BlockSpec((K * F1, F2), lambda i: (0, 0)),        # conv2 weights
            pl.BlockSpec((2 * F1, N_PAD), lambda i: (0, 0)),     # linear weights
        ],
        out_specs=pl.BlockSpec((tb, N_PAD), lambda i: (i, 0)),
        out_shape=jax.ShapeDtypeStruct((Bp, N_PAD), jnp.float32),
        compiler_params=pltpu.CompilerParams(
            dimension_semantics=("parallel",)),
    )(xt, ws, w2, wl)

    return out[:B, :N_OUT]


def init_params(key):
    """Deterministic parameters with PyTorch-default-like uniform init."""
    k1, k2, k3, k4, k5, k6 = jax.random.split(key, 6)
    b_c1 = 1.0 / np.sqrt(1 * K)
    c1w = jax.random.uniform(k1, (F1, 1, K), jnp.float32, -b_c1, b_c1)
    c1b = jax.random.uniform(k2, (F1,), jnp.float32, -b_c1, b_c1)
    b_c2 = 1.0 / np.sqrt(F1 * K)
    c2w = jax.random.uniform(k3, (F2, F1, K), jnp.float32, -b_c2, b_c2)
    c2b = jax.random.uniform(k4, (F2,), jnp.float32, -b_c2, b_c2)
    b_l = 1.0 / np.sqrt(DIM1)
    lw = jax.random.uniform(k5, (N_OUT, DIM1), jnp.float32, -b_l, b_l)
    lb = jax.random.uniform(k6, (N_OUT,), jnp.float32, -b_l, b_l)
    return c1w, c1b, c2w, c2b, lw, lb


def torch_reference(x, c1w, c1b, c2w, c2b, lw, lb):
    """Pure-JAX (f32) replica of the PyTorch forward (eval mode) for validation."""
    dn = ('NCH', 'OIH', 'NCH')
    o1 = jax.lax.conv_general_dilated(x, c1w, (1,), 'VALID', dimension_numbers=dn)
    o1 = jax.nn.relu(o1 + c1b[None, :, None])
    p1 = jax.lax.reduce_window(o1, -np.inf, jax.lax.max,
                               (1, 1, POOL), (1, 1, POOL), 'VALID')
    o2 = jax.lax.conv_general_dilated(p1, c2w, (1,), 'VALID', dimension_numbers=dn)
    o2 = jax.nn.relu(o2 + c2b[None, :, None])
    p2 = jax.lax.reduce_window(o2, -np.inf, jax.lax.max,
                               (1, 1, POOL), (1, 1, POOL), 'VALID')
    flat = p2.reshape(p2.shape[0], DIM1)    # torch: x.view(-1, dim1)
    return flat @ lw.T + lb


if __name__ == "__main__":
    key = jax.random.PRNGKey(0)
    pkey, xkey = jax.random.split(key)
    params = init_params(pkey)
    prepped = prepare_params(params)          # one-time weight preprocessing

    B = 2
    x = jax.random.normal(xkey, (B, 1, WIN), jnp.float32)   # (B, 1, 30) NCL

    out = cnn_forward(x, prepped)
    out = jax.block_until_ready(out)

    ref = torch_reference(x, *params)
    assert out.shape == (B, N_OUT), out.shape
    # bf16 MXU operands with f32 accumulation -> widen tolerance vs f32 reference
    err = float(np.max(np.abs(np.asarray(out) - np.asarray(ref))))
    assert np.allclose(np.asarray(out), np.asarray(ref), rtol=2e-2, atol=2e-2), err

    print("KERNEL_OK")
</pallas_src>

<mosaic_0001>
module attributes {stable_mosaic.version = 11 : i64} {
  func.func @cnn_kernel(%arg0: i32, %arg1: memref<8x8x8xf32, #tpu.memory_space<vmem>>, %arg2: memref<8x128xf32, #tpu.memory_space<vmem>>, %arg3: memref<256x32xbf16, #tpu.memory_space<vmem>>, %arg4: memref<256x128xbf16, #tpu.memory_space<vmem>>, %arg5: memref<8x128xf32, #tpu.memory_space<vmem>>) attributes {dimension_semantics = [#tpu.dimension_semantics<parallel>], iteration_bounds = array<i64: 1>, scalar_prefetch = 0 : i64, scratch_operands = 0 : i64, tpu.core_type = #tpu.core_type<tc>, window_params = [{transform_indices = @transform_0, window_bounds = array<i64: 8, 8, 8>}, {pipeline_mode = #tpu.pipeline_mode<synchronous>, transform_indices = @transform_1, window_bounds = array<i64: 8, 128>}, {pipeline_mode = #tpu.pipeline_mode<synchronous>, transform_indices = @transform_2, window_bounds = array<i64: 256, 32>}, {pipeline_mode = #tpu.pipeline_mode<synchronous>, transform_indices = @transform_3, window_bounds = array<i64: 256, 128>}, {transform_indices = @transform_4, window_bounds = array<i64: 8, 128>}]} {
    %c0 = arith.constant 0 : index
    %c0_0 = arith.constant 0 : index
    %c0_1 = arith.constant 0 : index
    %0 = vector.load %arg1[%c0, %c0_0, %c0_1] : memref<8x8x8xf32, #tpu.memory_space<vmem>>, vector<8x8x8xf32>
    %c0_2 = arith.constant 0 : index
    %c0_3 = arith.constant 0 : index
    %1 = vector.load %arg2[%c0_2, %c0_3] : memref<8x128xf32, #tpu.memory_space<vmem>>, vector<8x128xf32>
    %c0_4 = arith.constant 0 : index
    %c0_5 = arith.constant 0 : index
    %2 = vector.load %arg3[%c0_4, %c0_5] : memref<256x32xbf16, #tpu.memory_space<vmem>>, vector<256x32xbf16>
    %c0_6 = arith.constant 0 : index
    %c0_7 = arith.constant 0 : index
    %3 = vector.load %arg4[%c0_6, %c0_7] : memref<256x128xbf16, #tpu.memory_space<vmem>>, vector<256x128xbf16>
    %4 = vector.extract_strided_slice %1 {offsets = [0, 0], sizes = [1, 128], strides = [1, 1]} : vector<8x128xf32> to vector<1x128xf32>
    %5 = vector.shape_cast %4 : vector<1x128xf32> to vector<1x1x128xf32>
    %6 = vector.extract_strided_slice %1 {offsets = [1, 0], sizes = [1, 128], strides = [1, 1]} : vector<8x128xf32> to vector<1x128xf32>
    %7 = vector.shape_cast %6 : vector<1x128xf32> to vector<1x1x128xf32>
    %8 = vector.extract_strided_slice %1 {offsets = [2, 0], sizes = [1, 128], strides = [1, 1]} : vector<8x128xf32> to vector<1x128xf32>
    %9 = vector.shape_cast %8 : vector<1x128xf32> to vector<1x1x128xf32>
    %10 = vector.extract_strided_slice %1 {offsets = [3, 0], sizes = [1, 32], strides = [1, 1]} : vector<8x128xf32> to vector<1x32xf32>
    %11 = vector.extract_strided_slice %1 {offsets = [4, 0], sizes = [1, 128], strides = [1, 1]} : vector<8x128xf32> to vector<1x128xf32>
    %12 = vector.extract_strided_slice %0 {offsets = [0, 0, 0], sizes = [8, 7, 1], strides = [1, 1, 1]} : vector<8x8x8xf32> to vector<8x7x1xf32>
    %13 = vector.extract_strided_slice %0 {offsets = [0, 0, 1], sizes = [8, 7, 1], strides = [1, 1, 1]} : vector<8x8x8xf32> to vector<8x7x1xf32>
    %14 = vector.shape_cast %13 : vector<8x7x1xf32> to vector<8x7x1xf32>
    %15 = vector.broadcast %14 : vector<8x7x1xf32> to vector<8x7x128xf32>
    %16 = vector.extract_strided_slice %0 {offsets = [0, 0, 2], sizes = [8, 7, 1], strides = [1, 1, 1]} : vector<8x8x8xf32> to vector<8x7x1xf32>
    %17 = vector.shape_cast %16 : vector<8x7x1xf32> to vector<8x7x1xf32>
    %18 = vector.broadcast %17 : vector<8x7x1xf32> to vector<8x7x128xf32>
    %19 = vector.extract_strided_slice %0 {offsets = [0, 0, 3], sizes = [8, 7, 1], strides = [1, 1, 1]} : vector<8x8x8xf32> to vector<8x7x1xf32>
    %20 = vector.shape_cast %19 : vector<8x7x1xf32> to vector<8x7x1xf32>
    %21 = vector.broadcast %20 : vector<8x7x1xf32> to vector<8x7x128xf32>
    %22 = vector.extract_strided_slice %0 {offsets = [0, 0, 4], sizes = [8, 7, 1], strides = [1, 1, 1]} : vector<8x8x8xf32> to vector<8x7x1xf32>
    %23 = vector.broadcast %12 : vector<8x7x1xf32> to vector<8x7x128xf32>
    %24 = vector.broadcast %5 : vector<1x1x128xf32> to vector<8x7x128xf32>
    %25 = arith.mulf %23, %24 : vector<8x7x128xf32>
    %26 = vector.broadcast %7 : vector<1x1x128xf32> to vector<8x7x128xf32>
    %27 = arith.mulf %15, %26 : vector<8x7x128xf32>
    %28 = arith.addf %25, %27 : vector<8x7x128xf32>
    %29 = vector.broadcast %5 : vector<1x1x128xf32> to vector<8x7x128xf32>
    %30 = arith.mulf %15, %29 : vector<8x7x128xf32>
    %31 = vector.broadcast %7 : vector<1x1x128xf32> to vector<8x7x128xf32>
    %32 = arith.mulf %18, %31 : vector<8x7x128xf32>
    %33 = arith.addf %30, %32 : vector<8x7x128xf32>
    %34 = arith.maximumf %28, %33 : vector<8x7x128xf32>
    %35 = vector.broadcast %9 : vector<1x1x128xf32> to vector<8x7x128xf32>
    %36 = arith.addf %34, %35 : vector<8x7x128xf32>
    %cst = arith.constant 0.000000e+00 : f32
    %37 = vector.broadcast %cst : f32 to vector<8x7x128xf32>
    %38 = arith.maximumf %36, %37 : vector<8x7x128xf32>
    %39 = vector.broadcast %5 : vector<1x1x128xf32> to vector<8x7x128xf32>
    %40 = arith.mulf %18, %39 : vector<8x7x128xf32>
    %41 = vector.broadcast %7 : vector<1x1x128xf32> to vector<8x7x128xf32>
    %42 = arith.mulf %21, %41 : vector<8x7x128xf32>
    %43 = arith.addf %40, %42 : vector<8x7x128xf32>
    %44 = vector.broadcast %5 : vector<1x1x128xf32> to vector<8x7x128xf32>
    %45 = arith.mulf %21, %44 : vector<8x7x128xf32>
    %46 = vector.broadcast %22 : vector<8x7x1xf32> to vector<8x7x128xf32>
    %47 = vector.broadcast %7 : vector<1x1x128xf32> to vector<8x7x128xf32>
    %48 = arith.mulf %46, %47 : vector<8x7x128xf32>
    %49 = arith.addf %45, %48 : vector<8x7x128xf32>
    %50 = arith.maximumf %43, %49 : vector<8x7x128xf32>
    %51 = vector.broadcast %9 : vector<1x1x128xf32> to vector<8x7x128xf32>
    %52 = arith.addf %50, %51 : vector<8x7x128xf32>
    %cst_8 = arith.constant 0.000000e+00 : f32
    %53 = vector.broadcast %cst_8 : f32 to vector<8x7x128xf32>
    %54 = arith.maximumf %52, %53 : vector<8x7x128xf32>
    %cst_9 = arith.constant 0.000000e+00 : f32
    %55 = vector.broadcast %cst_9 : f32 to vector<8x2x256xf32>
    %56 = vector.extract_strided_slice %38 {offsets = [0, 0, 0], sizes = [8, 6, 128], strides = [1, 1, 1]} : vector<8x7x128xf32> to vector<8x6x128xf32>
    %57 = vector.extract_strided_slice %54 {offsets = [0, 0, 0], sizes = [8, 6, 128], strides = [1, 1, 1]} : vector<8x7x128xf32> to vector<8x6x128xf32>
    %58 = tpu.concatenate %56, %57 in 2 : vector<8x6x128xf32>, vector<8x6x128xf32> -> vector<8x6x256xf32>
    %59 = vector.extract_strided_slice %54 {offsets = [0, 0, 0], sizes = [8, 6, 128], strides = [1, 1, 1]} : vector<8x7x128xf32> to vector<8x6x128xf32>
    %60 = vector.extract_strided_slice %38 {offsets = [0, 1, 0], sizes = [8, 6, 128], strides = [1, 1, 1]} : vector<8x7x128xf32> to vector<8x6x128xf32>
    %61 = tpu.concatenate %59, %60 in 2 : vector<8x6x128xf32>, vector<8x6x128xf32> -> vector<8x6x256xf32>
    %62 = tpu.concatenate %58, %55, %61, %55 in 1 : vector<8x6x256xf32>, vector<8x2x256xf32>, vector<8x6x256xf32>, vector<8x2x256xf32> -> vector<8x16x256xf32>
    %63 = arith.truncf %62 : vector<8x16x256xf32> to vector<8x16x256xbf16>
    %64 = vector.shape_cast %63 : vector<8x16x256xbf16> to vector<128x256xbf16>
    %cst_10 = arith.constant dense<0.000000e+00> : vector<128x32xf32>
    %65 = tpu.matmul %64, %2, %cst_10 {dimension_numbers = #tpu.dot_dimension_numbers<[1], [0], [0], [1], [0, 0, 1, 1], [], []>} : vector<128x256xbf16>, vector<256x32xbf16>, vector<128x32xf32> -> vector<128x32xf32>
    %66 = vector.broadcast %10 : vector<1x32xf32> to vector<128x32xf32>
    %67 = arith.addf %65, %66 : vector<128x32xf32>
    %cst_11 = arith.constant 0.000000e+00 : f32
    %68 = vector.broadcast %cst_11 : f32 to vector<128x32xf32>
    %69 = arith.maximumf %67, %68 : vector<128x32xf32>
    %70 = vector.shape_cast %69 : vector<128x32xf32> to vector<8x16x32xf32>
    %71 = vector.extract_strided_slice %70 {offsets = [0, 0, 0], sizes = [8, 8, 32], strides = [1, 1, 1]} : vector<8x16x32xf32> to vector<8x8x32xf32>
    %72 = vector.extract_strided_slice %70 {offsets = [0, 8, 0], sizes = [8, 8, 32], strides = [1, 1, 1]} : vector<8x16x32xf32> to vector<8x8x32xf32>
    %73 = arith.maximumf %71, %72 : vector<8x8x32xf32>
    %74 = vector.shape_cast %73 : vector<8x8x32xf32> to vector<8x256xf32>
    %75 = arith.truncf %74 : vector<8x256xf32> to vector<8x256xbf16>
    %cst_12 = arith.constant dense<0.000000e+00> : vector<8x128xf32>
    %76 = tpu.matmul %75, %3, %cst_12 {dimension_numbers = #tpu.dot_dimension_numbers<[1], [0], [0], [1], [0, 0, 1, 1], [], []>} : vector<8x256xbf16>, vector<256x128xbf16>, vector<8x128xf32> -> vector<8x128xf32>
    %77 = vector.broadcast %11 : vector<1x128xf32> to vector<8x128xf32>
    %78 = arith.addf %76, %77 : vector<8x128xf32>
    %c0_13 = arith.constant 0 : index
    %c0_14 = arith.constant 0 : index
    %79 = vector.load %arg5[%c0_13, %c0_14] : memref<8x128xf32, #tpu.memory_space<vmem>>, vector<8x128xf32>
    tpu.vector_store %arg5[%c0_13, %c0_14], %78 {strides = array<i32>} : memref<8x128xf32, #tpu.memory_space<vmem>>, vector<8x128xf32>,
    return
  }
  func.func @transform_0(%arg0: i32) -> (i32, i32, i32) {
    %c0_i32 = arith.constant 0 : i32
    %c0_i32_0 = arith.constant 0 : i32
    %c0_i32_1 = arith.constant 0 : i32
    return %arg0, %c0_i32, %c0_i32_0 : i32, i32, i32
  }
  func.func @transform_1(%arg0: i32) -> (i32, i32) {
    %c0_i32 = arith.constant 0 : i32
    %c0_i32_0 = arith.constant 0 : i32
    %c0_i32_1 = arith.constant 0 : i32
    return %c0_i32, %c0_i32_0 : i32, i32
  }
  func.func @transform_2(%arg0: i32) -> (i32, i32) {
    %c0_i32 = arith.constant 0 : i32
    %c0_i32_0 = arith.constant 0 : i32
    %c0_i32_1 = arith.constant 0 : i32
    return %c0_i32, %c0_i32_0 : i32, i32
  }
  func.func @transform_3(%arg0: i32) -> (i32, i32) {
    %c0_i32 = arith.constant 0 : i32
    %c0_i32_0 = arith.constant 0 : i32
    %c0_i32_1 = arith.constant 0 : i32
    return %c0_i32, %c0_i32_0 : i32, i32
  }
  func.func @transform_4(%arg0: i32) -> (i32, i32) {
    %c0_i32 = arith.constant 0 : i32
    %c0_i32_0 = arith.constant 0 : i32
    return %arg0, %c0_i32 : i32, i32
  }
}

</mosaic_0001>

<llo_original>
// kernel: cnn_forward.1
$region0: #{cnn_forward.1}
  #allocation0 [shape = 'u32[]', space=smem, size = 0x4, offset = 0x4, fixed_abs, tag = 'smem constant byte address 0x4 - core index']
  #allocation1 [shape = 'u32[144,128]{1,0:T(1,128)}', space=vmem, size = 0x12000, scoped, tag = 'internal scratch']
  %s0 = inlined_call_operand.vmem [shape: f32[8,8,8], index: 0, kind: input, shape index: {}]
  %s1 = inlined_call_operand.vmem [shape: f32[8,128], index: 1, kind: input, shape index: {}]
  %s2 = inlined_call_operand.vmem [shape: bf16[256,32], index: 2, kind: input, shape index: {}]
  %s3 = inlined_call_operand.vmem [shape: bf16[256,128], index: 3, kind: input, shape index: {}]
  %s4 = inlined_call_operand.vmem [shape: f32[8,128], index: 4, kind: output, shape index: {}]
  %s5 = sld [smem:[#allocation0]]
  $region26: #{cnn_forward.1} parent=0
    _
  %s7 = ssub.s32 1, %s5
  %s8 = scalar_select 0, %s7, %s5
  // Predicated region
  $region2: #{cnn_forward.1} parent=0 // pred_check
    _
  $region3: #{cnn_forward.1} parent=0 // pred_check_branch
    %10 = sbr.rel (0) target = $region5
  $region4: #{cnn_forward.1} parent=0 // pred_region
    _
  $region5: #{cnn_forward.1} parent=0 // pred_fallthru
    _
  // Predicated region
  $region6: #{cnn_forward.1} parent=0 // pred_check
    _
  $region7: #{cnn_forward.1} parent=0 // pred_check_branch
    %12 = sbr.rel (0) target = $region9
  $region8: #{cnn_forward.1} parent=0 // pred_region
    _
  $region9: #{cnn_forward.1} parent=0 // pred_fallthru
    _
  // Predicated region
  $region10: #{cnn_forward.1} parent=0 // pred_check
    _
  $region11: #{cnn_forward.1} parent=0 // pred_check_branch
    %14 = sbr.rel (0) target = $region13
  $region12: #{cnn_forward.1} parent=0 // pred_region
    _
  $region13: #{cnn_forward.1} parent=0 // pred_fallthru
    _
  // Predicated region
  $region14: #{cnn_forward.1} parent=0 // pred_check
    _
  $region15: #{cnn_forward.1} parent=0 // pred_check_branch
    %16 = sbr.rel (0) target = $region17
  $region16: #{cnn_forward.1} parent=0 // pred_region
    _
  $region17: #{cnn_forward.1} parent=0 // pred_fallthru
    _
  %v18 = vld [vmem:[%s0] sm:$0xff]
  %v19 = vld [vmem:[%s0 + $0x8] sm:$0xff]
  %v20 = vld [vmem:[%s0 + $0x10] sm:$0xff]
  %v21 = vld [vmem:[%s0 + $0x18] sm:$0xff]
  %v22 = vld [vmem:[%s0 + $0x20] sm:$0xff]
  %v23 = vld [vmem:[%s0 + $0x28] sm:$0xff]
  %v24 = vld [vmem:[%s0 + $0x30] sm:$0xff]
  %v25 = vld [vmem:[%s0 + $0x38] sm:$0xff]
  %v26 = vld [vmem:[%s1] sm:$0xff]
  %v27 = vld [vmem:[%s2] sm:$0xf]
  %v28 = vld [vmem:[%s2 + $0x4] sm:$0xf]
  %v29 = vld [vmem:[%s2 + $0x8] sm:$0xf]
  %v30 = vld [vmem:[%s2 + $0xc] sm:$0xf]
  %v31 = vld [vmem:[%s2 + $0x10] sm:$0xf]
  %v32 = vld [vmem:[%s2 + $0x14] sm:$0xf]
  %v33 = vld [vmem:[%s2 + $0x18] sm:$0xf]
  %v34 = vld [vmem:[%s2 + $0x1c] sm:$0xf]
  %v35 = vld [vmem:[%s2 + $0x20] sm:$0xf]
  %v36 = vld [vmem:[%s2 + $0x24] sm:$0xf]
  %v37 = vld [vmem:[%s2 + $0x28] sm:$0xf]
  %v38 = vld [vmem:[%s2 + $0x2c] sm:$0xf]
  %v39 = vld [vmem:[%s2 + $0x30] sm:$0xf]
  %v40 = vld [vmem:[%s2 + $0x34] sm:$0xf]
  %v41 = vld [vmem:[%s2 + $0x38] sm:$0xf]
  %v42 = vld [vmem:[%s2 + $0x3c] sm:$0xf]
  %v43 = vld [vmem:[%s2 + $0x40] sm:$0xf]
  %v44 = vld [vmem:[%s2 + $0x44] sm:$0xf]
  %v45 = vld [vmem:[%s2 + $0x48] sm:$0xf]
  %v46 = vld [vmem:[%s2 + $0x4c] sm:$0xf]
  %v47 = vld [vmem:[%s2 + $0x50] sm:$0xf]
  %v48 = vld [vmem:[%s2 + $0x54] sm:$0xf]
  %v49 = vld [vmem:[%s2 + $0x58] sm:$0xf]
  %v50 = vld [vmem:[%s2 + $0x5c] sm:$0xf]
  %v51 = vld [vmem:[%s2 + $0x60] sm:$0xf]
  %v52 = vld [vmem:[%s2 + $0x64] sm:$0xf]
  %v53 = vld [vmem:[%s2 + $0x68] sm:$0xf]
  %v54 = vld [vmem:[%s2 + $0x6c] sm:$0xf]
  %v55 = vld [vmem:[%s2 + $0x70] sm:$0xf]
  %v56 = vld [vmem:[%s2 + $0x74] sm:$0xf]
  %v57 = vld [vmem:[%s2 + $0x78] sm:$0xf]
  %v58 = vld [vmem:[%s2 + $0x7c] sm:$0xf]
  %v59 = vld [vmem:[%s3] sm:$0xf]
  %v60 = vld [vmem:[%s3 + $0x4] sm:$0xf]
  %v61 = vld [vmem:[%s3 + $0x8] sm:$0xf]
  %v62 = vld [vmem:[%s3 + $0xc] sm:$0xf]
  %v63 = vld [vmem:[%s3 + $0x10] sm:$0xf]
  %v64 = vld [vmem:[%s3 + $0x14] sm:$0xf]
  %v65 = vld [vmem:[%s3 + $0x18] sm:$0xf]
  %v66 = vld [vmem:[%s3 + $0x1c] sm:$0xf]
  %v67 = vld [vmem:[%s3 + $0x20] sm:$0xf]
  %v68 = vld [vmem:[%s3 + $0x24] sm:$0xf]
  %v69 = vld [vmem:[%s3 + $0x28] sm:$0xf]
  %v70 = vld [vmem:[%s3 + $0x2c] sm:$0xf]
  %v71 = vld [vmem:[%s3 + $0x30] sm:$0xf]
  %v72 = vld [vmem:[%s3 + $0x34] sm:$0xf]
  %v73 = vld [vmem:[%s3 + $0x38] sm:$0xf]
  %v74 = vld [vmem:[%s3 + $0x3c] sm:$0xf]
  %v75 = vld [vmem:[%s3 + $0x40] sm:$0xf]
  %v76 = vld [vmem:[%s3 + $0x44] sm:$0xf]
  %v77 = vld [vmem:[%s3 + $0x48] sm:$0xf]
  %v78 = vld [vmem:[%s3 + $0x4c] sm:$0xf]
  %v79 = vld [vmem:[%s3 + $0x50] sm:$0xf]
  %v80 = vld [vmem:[%s3 + $0x54] sm:$0xf]
  %v81 = vld [vmem:[%s3 + $0x58] sm:$0xf]
  %v82 = vld [vmem:[%s3 + $0x5c] sm:$0xf]
  %v83 = vld [vmem:[%s3 + $0x60] sm:$0xf]
  %v84 = vld [vmem:[%s3 + $0x64] sm:$0xf]
  %v85 = vld [vmem:[%s3 + $0x68] sm:$0xf]
  %v86 = vld [vmem:[%s3 + $0x6c] sm:$0xf]
  %v87 = vld [vmem:[%s3 + $0x70] sm:$0xf]
  %v88 = vld [vmem:[%s3 + $0x74] sm:$0xf]
  %v89 = vld [vmem:[%s3 + $0x78] sm:$0xf]
  %v90 = vld [vmem:[%s3 + $0x7c] sm:$0xf]
  %92 = vset.pattern.permute.xlu0 1
  %93 = vperm.xlu0 %92, %v18
  %v94 = vpop.permute.xlu0 %93
  %97 = vset.pattern.permute.xlu0 1
  %98 = vperm.xlu0 %97, %v19
  %v99 = vpop.permute.xlu0 %98
  %102 = vset.pattern.permute.xlu0 1
  %103 = vperm.xlu0 %102, %v20
  %v104 = vpop.permute.xlu0 %103
  %107 = vset.pattern.permute.xlu0 1
  %108 = vperm.xlu0 %107, %v21
  %v109 = vpop.permute.xlu0 %108
  %112 = vset.pattern.permute.xlu0 1
  %113 = vperm.xlu0 %112, %v22
  %v114 = vpop.permute.xlu0 %113
  %117 = vset.pattern.permute.xlu0 1
  %118 = vperm.xlu0 %117, %v23
  %v119 = vpop.permute.xlu0 %118
  %122 = vset.pattern.permute.xlu0 1
  %123 = vperm.xlu0 %122, %v24
  %v124 = vpop.permute.xlu0 %123
  %127 = vset.pattern.permute.xlu0 1
  %128 = vperm.xlu0 %127, %v25
  %v129 = vpop.permute.xlu0 %128
  %131 = vset.pattern.permute.xlu0 2
  %132 = vperm.xlu0 %131, %v18
  %v133 = vpop.permute.xlu0 %132
  %135 = vset.pattern.permute.xlu0 2
  %136 = vperm.xlu0 %135, %v19
  %v137 = vpop.permute.xlu0 %136
  %139 = vset.pattern.permute.xlu0 2
  %140 = vperm.xlu0 %139, %v20
  %v141 = vpop.permute.xlu0 %140
  %143 = vset.pattern.permute.xlu0 2
  %144 = vperm.xlu0 %143, %v21
  %v145 = vpop.permute.xlu0 %144
  %147 = vset.pattern.permute.xlu0 2
  %148 = vperm.xlu0 %147, %v22
  %v149 = vpop.permute.xlu0 %148
  %151 = vset.pattern.permute.xlu0 2
  %152 = vperm.xlu0 %151, %v23
  %v153 = vpop.permute.xlu0 %152
  %155 = vset.pattern.permute.xlu0 2
  %156 = vperm.xlu0 %155, %v24
  %v157 = vpop.permute.xlu0 %156
  %159 = vset.pattern.permute.xlu0 2
  %160 = vperm.xlu0 %159, %v25
  %v161 = vpop.permute.xlu0 %160
  %163 = vset.pattern.permute.xlu0 3
  %164 = vperm.xlu0 %163, %v18
  %v165 = vpop.permute.xlu0 %164
  %167 = vset.pattern.permute.xlu0 3
  %168 = vperm.xlu0 %167, %v19
  %v169 = vpop.permute.xlu0 %168
  %171 = vset.pattern.permute.xlu0 3
  %172 = vperm.xlu0 %171, %v20
  %v173 = vpop.permute.xlu0 %172
  %175 = vset.pattern.permute.xlu0 3
  %176 = vperm.xlu0 %175, %v21
  %v177 = vpop.permute.xlu0 %176
  %179 = vset.pattern.permute.xlu0 3
  %180 = vperm.xlu0 %179, %v22
  %v181 = vpop.permute.xlu0 %180
  %183 = vset.pattern.permute.xlu0 3
  %184 = vperm.xlu0 %183, %v23
  %v185 = vpop.permute.xlu0 %184
  %187 = vset.pattern.permute.xlu0 3
  %188 = vperm.xlu0 %187, %v24
  %v189 = vpop.permute.xlu0 %188
  %191 = vset.pattern.permute.xlu0 3
  %192 = vperm.xlu0 %191, %v25
  %v193 = vpop.permute.xlu0 %192
  %195 = vset.pattern.permute.xlu0 0
  %196 = vperm.xlu0 %195, %v18
  %v197 = vpop.permute.xlu0 %196
  %199 = vset.pattern.permute.xlu0 0
  %200 = vperm.xlu0 %199, %v19
  %v201 = vpop.permute.xlu0 %200
  %203 = vset.pattern.permute.xlu0 0
  %204 = vperm.xlu0 %203, %v20
  %v205 = vpop.permute.xlu0 %204
  %207 = vset.pattern.permute.xlu0 0
  %208 = vperm.xlu0 %207, %v21
  %v209 = vpop.permute.xlu0 %208
  %211 = vset.pattern.permute.xlu0 0
  %212 = vperm.xlu0 %211, %v22
  %v213 = vpop.permute.xlu0 %212
  %215 = vset.pattern.permute.xlu0 0
  %216 = vperm.xlu0 %215, %v23
  %v217 = vpop.permute.xlu0 %216
  %219 = vset.pattern.permute.xlu0 0
  %220 = vperm.xlu0 %219, %v24
  %v221 = vpop.permute.xlu0 %220
  %223 = vset.pattern.permute.xlu0 0
  %224 = vperm.xlu0 %223, %v25
  %v225 = vpop.permute.xlu0 %224
  %v227 = vlaneseq
  %v228 = vshrl.u32 %v227, 7
  %v229 = vsub.s32 0, %v228
  %v230 = vrot.slane %v26, %v229
  %v231 = vmul.f32 %v197, %v230
  %v232 = vmul.f32 %v201, %v230
  %v233 = vmul.f32 %v205, %v230
  %v234 = vmul.f32 %v209, %v230
  %v235 = vmul.f32 %v213, %v230
  %v236 = vmul.f32 %v217, %v230
  %v237 = vmul.f32 %v221, %v230
  %v238 = vmul.f32 %v225, %v230
  %v239 = vlaneseq
  %v240 = vshrl.u32 %v239, 7
  %v241 = vsub.s32 1, %v240
  %v242 = vrot.slane %v26, %v241
  %v243 = vmul.f32 %v94, %v242
  %v244 = vmul.f32 %v99, %v242
  %v245 = vmul.f32 %v104, %v242
  %v246 = vmul.f32 %v109, %v242
  %v247 = vmul.f32 %v114, %v242
  %v248 = vmul.f32 %v119, %v242
  %v249 = vmul.f32 %v124, %v242
  %v250 = vmul.f32 %v129, %v242
  %v251 = vadd.f32 %v231, %v243
  %v252 = vadd.f32 %v232, %v244
  %v253 = vadd.f32 %v233, %v245
  %v254 = vadd.f32 %v234, %v246
  %v255 = vadd.f32 %v235, %v247
  %v256 = vadd.f32 %v236, %v248
  %v257 = vadd.f32 %v237, %v249
  %v258 = vadd.f32 %v238, %v250
  %v259 = vmul.f32 %v94, %v230
  %v260 = vmul.f32 %v99, %v230
  %v261 = vmul.f32 %v104, %v230
  %v262 = vmul.f32 %v109, %v230
  %v263 = vmul.f32 %v114, %v230
  %v264 = vmul.f32 %v119, %v230
  %v265 = vmul.f32 %v124, %v230
  %v266 = vmul.f32 %v129, %v230
  %v267 = vmul.f32 %v133, %v242
  %v268 = vmul.f32 %v137, %v242
  %v269 = vmul.f32 %v141, %v242
  %v270 = vmul.f32 %v145, %v242
  %v271 = vmul.f32 %v149, %v242
  %v272 = vmul.f32 %v153, %v242
  %v273 = vmul.f32 %v157, %v242
  %v274 = vmul.f32 %v161, %v242
  %v275 = vadd.f32 %v259, %v267
  %v276 = vadd.f32 %v260, %v268
  %v277 = vadd.f32 %v261, %v269
  %v278 = vadd.f32 %v262, %v270
  %v279 = vadd.f32 %v263, %v271
  %v280 = vadd.f32 %v264, %v272
  %v281 = vadd.f32 %v265, %v273
  %v282 = vadd.f32 %v266, %v274
  %v283 = vmax.f32 %v251, %v275
  %v284 = vmax.f32 %v252, %v276
  %v285 = vmax.f32 %v253, %v277
  %v286 = vmax.f32 %v254, %v278
  %v287 = vmax.f32 %v255, %v279
  %v288 = vmax.f32 %v256, %v280
  %v289 = vmax.f32 %v257, %v281
  %v290 = vmax.f32 %v258, %v282
  %v291 = vlaneseq
  %v292 = vshrl.u32 %v291, 7
  %v293 = vsub.s32 2, %v292
  %v294 = vrot.slane %v26, %v293
  %v295 = vadd.f32 %v283, %v294
  %v296 = vadd.f32 %v284, %v294
  %v297 = vadd.f32 %v285, %v294
  %v298 = vadd.f32 %v286, %v294
  %v299 = vadd.f32 %v287, %v294
  %v300 = vadd.f32 %v288, %v294
  %v301 = vadd.f32 %v289, %v294
  %v302 = vadd.f32 %v290, %v294
  %v303 = vmax.f32 %v295, 0.0
  %v304 = vmax.f32 %v296, 0.0
  %v305 = vmax.f32 %v297, 0.0
  %v306 = vmax.f32 %v298, 0.0
  %v307 = vmax.f32 %v299, 0.0
  %v308 = vmax.f32 %v300, 0.0
  %v309 = vmax.f32 %v301, 0.0
  %v310 = vmax.f32 %v302, 0.0
  %v311 = vmul.f32 %v133, %v230
  %v312 = vmul.f32 %v137, %v230
  %v313 = vmul.f32 %v141, %v230
  %v314 = vmul.f32 %v145, %v230
  %v315 = vmul.f32 %v149, %v230
  %v316 = vmul.f32 %v153, %v230
  %v317 = vmul.f32 %v157, %v230
  %v318 = vmul.f32 %v161, %v230
  %v319 = vmul.f32 %v165, %v242
  %v320 = vmul.f32 %v169, %v242
  %v321 = vmul.f32 %v173, %v242
  %v322 = vmul.f32 %v177, %v242
  %v323 = vmul.f32 %v181, %v242
  %v324 = vmul.f32 %v185, %v242
  %v325 = vmul.f32 %v189, %v242
  %v326 = vmul.f32 %v193, %v242
  %v327 = vadd.f32 %v311, %v319
  %v328 = vadd.f32 %v312, %v320
  %v329 = vadd.f32 %v313, %v321
  %v330 = vadd.f32 %v314, %v322
  %v331 = vadd.f32 %v315, %v323
  %v332 = vadd.f32 %v316, %v324
  %v333 = vadd.f32 %v317, %v325
  %v334 = vadd.f32 %v318, %v326
  %v335 = vmul.f32 %v165, %v230
  %v336 = vmul.f32 %v169, %v230
  %v337 = vmul.f32 %v173, %v230
  %v338 = vmul.f32 %v177, %v230
  %v339 = vmul.f32 %v181, %v230
  %v340 = vmul.f32 %v185, %v230
  %v341 = vmul.f32 %v189, %v230
  %v342 = vmul.f32 %v193, %v230
  %343 = vset.pattern.permute.xlu0 4
  %344 = vperm.xlu0 %343, %v18
  %v345 = vpop.permute.xlu0 %344
  %347 = vset.pattern.permute.xlu0 4
  %348 = vperm.xlu0 %347, %v19
  %v349 = vpop.permute.xlu0 %348
  %351 = vset.pattern.permute.xlu0 4
  %352 = vperm.xlu0 %351, %v20
  %v353 = vpop.permute.xlu0 %352
  %355 = vset.pattern.permute.xlu0 4
  %356 = vperm.xlu0 %355, %v21
  %v357 = vpop.permute.xlu0 %356
  %359 = vset.pattern.permute.xlu0 4
  %360 = vperm.xlu0 %359, %v22
  %v361 = vpop.permute.xlu0 %360
  %363 = vset.pattern.permute.xlu0 4
  %364 = vperm.xlu0 %363, %v23
  %v365 = vpop.permute.xlu0 %364
  %367 = vset.pattern.permute.xlu0 4
  %368 = vperm.xlu0 %367, %v24
  %v369 = vpop.permute.xlu0 %368
  %371 = vset.pattern.permute.xlu0 4
  %372 = vperm.xlu0 %371, %v25
  %v373 = vpop.permute.xlu0 %372
  %v375 = vmul.f32 %v345, %v242
  %v376 = vmul.f32 %v349, %v242
  %v377 = vmul.f32 %v353, %v242
  %v378 = vmul.f32 %v357, %v242
  %v379 = vmul.f32 %v361, %v242
  %v380 = vmul.f32 %v365, %v242
  %v381 = vmul.f32 %v369, %v242
  %v382 = vmul.f32 %v373, %v242
  %v383 = vadd.f32 %v335, %v375
  %v384 = vadd.f32 %v336, %v376
  %v385 = vadd.f32 %v337, %v377
  %v386 = vadd.f32 %v338, %v378
  %v387 = vadd.f32 %v339, %v379
  %v388 = vadd.f32 %v340, %v380
  %v389 = vadd.f32 %v341, %v381
  %v390 = vadd.f32 %v342, %v382
  %v391 = vmax.f32 %v327, %v383
  %v392 = vmax.f32 %v328, %v384
  %v393 = vmax.f32 %v329, %v385
  %v394 = vmax.f32 %v330, %v386
  %v395 = vmax.f32 %v331, %v387
  %v396 = vmax.f32 %v332, %v388
  %v397 = vmax.f32 %v333, %v389
  %v398 = vmax.f32 %v334, %v390
  %v399 = vadd.f32 %v391, %v294
  %v400 = vadd.f32 %v392, %v294
  %v401 = vadd.f32 %v393, %v294
  %v402 = vadd.f32 %v394, %v294
  %v403 = vadd.f32 %v395, %v294
  %v404 = vadd.f32 %v396, %v294
  %v405 = vadd.f32 %v397, %v294
  %v406 = vadd.f32 %v398, %v294
  %v407 = vmax.f32 %v399, 0.0
  %v408 = vmax.f32 %v400, 0.0
  %v409 = vmax.f32 %v401, 0.0
  %v410 = vmax.f32 %v402, 0.0
  %v411 = vmax.f32 %v403, 0.0
  %v412 = vmax.f32 %v404, 0.0
  %v413 = vmax.f32 %v405, 0.0
  %v414 = vmax.f32 %v406, 0.0
  %v423 = vrot.slane %v303, 1
  %v424 = vrot.slane %v304, 1
  %v425 = vrot.slane %v305, 1
  %v426 = vrot.slane %v306, 1
  %v427 = vrot.slane %v307, 1
  %v428 = vrot.slane %v308, 1
  %v429 = vrot.slane %v309, 1
  %v430 = vrot.slane %v310, 1
  %vm439 = vcmask 1045504
  %v440 = vsel %vm439, %v303, 0.0
  %v441 = vsel %vm439, %v407, 0.0
  %v442 = vsel %vm439, %v304, 0.0
  %v443 = vsel %vm439, %v408, 0.0
  %v444 = vsel %vm439, %v305, 0.0
  %v445 = vsel %vm439, %v409, 0.0
  %v446 = vsel %vm439, %v306, 0.0
  %v447 = vsel %vm439, %v410, 0.0
  %v448 = vsel %vm439, %v307, 0.0
  %v449 = vsel %vm439, %v411, 0.0
  %v450 = vsel %vm439, %v308, 0.0
  %v451 = vsel %vm439, %v412, 0.0
  %v452 = vsel %vm439, %v309, 0.0
  %v453 = vsel %vm439, %v413, 0.0
  %v454 = vsel %vm439, %v310, 0.0
  %v455 = vsel %vm439, %v414, 0.0
  %v456 = vsel %vm439, %v423, 0.0
  %v457 = vsel %vm439, %v424, 0.0
  %v458 = vsel %vm439, %v425, 0.0
  %v459 = vsel %vm439, %v426, 0.0
  %v460 = vsel %vm439, %v427, 0.0
  %v461 = vsel %vm439, %v428, 0.0
  %v462 = vsel %vm439, %v429, 0.0
  %v463 = vsel %vm439, %v430, 0.0
  %v464 = vpack.c.bf16 %v441, %v440
  %v465 = vpack.c.bf16 %v456, %v441
  %v466 = vpack.c.bf16 %v443, %v442
  %v467 = vpack.c.bf16 %v457, %v443
  %v468 = vpack.c.bf16 %v445, %v444
  %v469 = vpack.c.bf16 %v458, %v445
  %v470 = vpack.c.bf16 %v447, %v446
  %v471 = vpack.c.bf16 %v459, %v447
  %v472 = vpack.c.bf16 %v449, %v448
  %v473 = vpack.c.bf16 %v460, %v449
  %v474 = vpack.c.bf16 %v451, %v450
  %v475 = vpack.c.bf16 %v461, %v451
  %v476 = vpack.c.bf16 %v453, %v452
  %v477 = vpack.c.bf16 %v462, %v453
  %v478 = vpack.c.bf16 %v455, %v454
  %v479 = vpack.c.bf16 %v463, %v455
  %v480 = vlaneseq
  %v481 = vshrl.u32 %v480, 7
  %v482 = vsub.s32 3, %v481
  %v483 = vrot.slane %v26, %v482
  %v516 = vunpack.c.l.b16 %v27
  %v517 = vunpack.c.l.b16 %v28
  %v518 = vunpack.c.l.b16 %v29
  %v519 = vunpack.c.l.b16 %v30
  %v520 = vunpack.c.l.b16 %v31
  %v521 = vunpack.c.l.b16 %v32
  %v522 = vunpack.c.l.b16 %v33
  %v523 = vunpack.c.l.b16 %v34
  %v524 = vunpack.c.l.b16 %v35
  %v525 = vunpack.c.l.b16 %v36
  %v526 = vunpack.c.l.b16 %v37
  %v527 = vunpack.c.l.b16 %v38
  %v528 = vunpack.c.l.b16 %v39
  %v529 = vunpack.c.l.b16 %v40
  %v530 = vunpack.c.l.b16 %v41
  %v531 = vunpack.c.l.b16 %v42
  %v532 = vunpack.c.l.b16 %v43
  %v533 = vunpack.c.l.b16 %v44
  %v534 = vunpack.c.l.b16 %v45
  %v535 = vunpack.c.l.b16 %v46
  %v536 = vunpack.c.l.b16 %v47
  %v537 = vunpack.c.l.b16 %v48
  %v538 = vunpack.c.l.b16 %v49
  %v539 = vunpack.c.l.b16 %v50
  %v540 = vunpack.c.l.b16 %v51
  %v541 = vunpack.c.l.b16 %v52
  %v542 = vunpack.c.l.b16 %v53
  %v543 = vunpack.c.l.b16 %v54
  %v544 = vunpack.c.l.b16 %v55
  %v545 = vunpack.c.l.b16 %v56
  %v546 = vunpack.c.l.b16 %v57
  %v547 = vunpack.c.l.b16 %v58
  %v548 = vpack.c.b16 %v517, %v516
  %v549 = vpack.c.b16 %v519, %v518
  %v550 = vpack.c.b16 %v521, %v520
  %v551 = vpack.c.b16 %v523, %v522
  %v552 = vpack.c.b16 %v525, %v524
  %v553 = vpack.c.b16 %v527, %v526
  %v554 = vpack.c.b16 %v529, %v528
  %v555 = vpack.c.b16 %v531, %v530
  %v556 = vpack.c.b16 %v533, %v532
  %v557 = vpack.c.b16 %v535, %v534
  %v558 = vpack.c.b16 %v537, %v536
  %v559 = vpack.c.b16 %v539, %v538
  %v560 = vpack.c.b16 %v541, %v540
  %v561 = vpack.c.b16 %v543, %v542
  %v562 = vpack.c.b16 %v545, %v544
  %v563 = vpack.c.b16 %v547, %v546
  %580 = vmatprep.subr.bf16.mxu0 0
  %581 = vmatpush1.bf16.msra.mxu0 %v555
  %582 = vmatprep.subr.bf16.mxu0 0
  %583 = vmatpush1.bf16.msra.mxu0 %v554
  %584 = vmatprep.subr.bf16.mxu0 0
  %585 = vmatpush1.bf16.msra.mxu0 %v553
  %586 = vmatprep.subr.bf16.mxu0 0
  %587 = vmatpush1.bf16.msra.mxu0 %v552
  %588 = vmatprep.subr.bf16.mxu0 0
  %589 = vmatpush1.bf16.msra.mxu0 %v551
  %590 = vmatprep.subr.bf16.mxu0 0
  %591 = vmatpush1.bf16.msra.mxu0 %v550
  %592 = vmatprep.subr.bf16.mxu0 0
  %593 = vmatpush1.bf16.msra.mxu0 %v549
  %594 = vmatprep.subr.bf16.mxu0 0
  %595 = vmatpush1.bf16.msra.mxu0 %v548
  %596 = vmatprep.subr.bf16.mxu0 0
  %597 = vmatpush2.bf16.msra.mxu0 %v563
  %598 = vmatprep.subr.bf16.mxu0 0
  %599 = vmatpush2.bf16.msra.mxu0 %v562
  %600 = vmatprep.subr.bf16.mxu0 0
  %601 = vmatpush2.bf16.msra.mxu0 %v561
  %602 = vmatprep.subr.bf16.mxu0 0
  %603 = vmatpush2.bf16.msra.mxu0 %v560
  %604 = vmatprep.subr.bf16.mxu0 0
  %605 = vmatpush2.bf16.msra.mxu0 %v559
  %606 = vmatprep.subr.bf16.mxu0 0
  %607 = vmatpush2.bf16.msra.mxu0 %v558
  %608 = vmatprep.subr.bf16.mxu0 0
  %609 = vmatpush2.bf16.msra.mxu0 %v557
  %610 = vmatprep.subr.bf16.mxu0 0
  %611 = vmatpush2.bf16.msra.mxu0 %v556
  %612 = vmatprep.mubr.bf16.mxu0 %v465
  %613 = vmatmul.mubr.bf16.gmra.mxu0 %v464
  %v614 = vpop.f32.mrf.mxu0
  %v615 = vadd.f32 %v483, %v614
  %v616 = vpop.f32.mrf.mxu0
  %v617 = vpop.f32.mrf.mxu0
  %v618 = vadd.f32 %v483, %v617
  %v619 = vpop.f32.mrf.mxu0
  %620 = vmatprep.mubr.bf16.mxu0 %v467
  %621 = vmatmul.mubr.bf16.gmra.mxu0 %v466
  %v622 = vpop.f32.mrf.mxu0
  %v623 = vadd.f32 %v483, %v622
  %v624 = vpop.f32.mrf.mxu0
  %v625 = vpop.f32.mrf.mxu0
  %v626 = vadd.f32 %v483, %v625
  %v627 = vpop.f32.mrf.mxu0
  %628 = vmatprep.mubr.bf16.mxu0 %v469
  %629 = vmatmul.mubr.bf16.gmra.mxu0 %v468
  %v630 = vpop.f32.mrf.mxu0
  %v631 = vadd.f32 %v483, %v630
  %v632 = vpop.f32.mrf.mxu0
  %v633 = vpop.f32.mrf.mxu0
  %v634 = vadd.f32 %v483, %v633
  %v635 = vpop.f32.mrf.mxu0
  %636 = vmatprep.mubr.bf16.mxu0 %v471
  %637 = vmatmul.mubr.bf16.gmra.mxu0 %v470
  %v638 = vpop.f32.mrf.mxu0
  %v639 = vadd.f32 %v483, %v638
  %v640 = vpop.f32.mrf.mxu0
  %v641 = vpop.f32.mrf.mxu0
  %v642 = vadd.f32 %v483, %v641
  %v643 = vpop.f32.mrf.mxu0
  %644 = vmatprep.mubr.bf16.mxu0 %v473
  %645 = vmatmul.mubr.bf16.gmra.mxu0 %v472
  %v646 = vpop.f32.mrf.mxu0
  %v647 = vadd.f32 %v483, %v646
  %v648 = vpop.f32.mrf.mxu0
  %v649 = vpop.f32.mrf.mxu0
  %v650 = vadd.f32 %v483, %v649
  %v651 = vpop.f32.mrf.mxu0
  %652 = vmatprep.mubr.bf16.mxu0 %v475
  %653 = vmatmul.mubr.bf16.gmra.mxu0 %v474
  %v654 = vpop.f32.mrf.mxu0
  %v655 = vadd.f32 %v483, %v654
  %v656 = vpop.f32.mrf.mxu0
  %v657 = vpop.f32.mrf.mxu0
  %v658 = vadd.f32 %v483, %v657
  %v659 = vpop.f32.mrf.mxu0
  %660 = vmatprep.mubr.bf16.mxu0 %v477
  %661 = vmatmul.mubr.bf16.gmra.mxu0 %v476
  %v662 = vpop.f32.mrf.mxu0
  %v663 = vadd.f32 %v483, %v662
  %v664 = vpop.f32.mrf.mxu0
  %v665 = vpop.f32.mrf.mxu0
  %v666 = vadd.f32 %v483, %v665
  %v667 = vpop.f32.mrf.mxu0
  %668 = vmatprep.mubr.bf16.mxu0 %v479
  %669 = vmatmul.mubr.bf16.gmra.mxu0 %v478
  %v670 = vpop.f32.mrf.mxu0
  %v671 = vadd.f32 %v483, %v670
  %v672 = vpop.f32.mrf.mxu0
  %v673 = vpop.f32.mrf.mxu0
  %v674 = vadd.f32 %v483, %v673
  %v675 = vpop.f32.mrf.mxu0
  %676 = vdwg.mxu0
  %v677 = vmax.f32 %v615, 0.0
  %v678 = vmax.f32 %v618, 0.0
  %v679 = vmax.f32 %v623, 0.0
  %v680 = vmax.f32 %v626, 0.0
  %v681 = vmax.f32 %v631, 0.0
  %v682 = vmax.f32 %v634, 0.0
  %v683 = vmax.f32 %v639, 0.0
  %v684 = vmax.f32 %v642, 0.0
  %v685 = vmax.f32 %v647, 0.0
  %v686 = vmax.f32 %v650, 0.0
  %v687 = vmax.f32 %v655, 0.0
  %v688 = vmax.f32 %v658, 0.0
  %v689 = vmax.f32 %v663, 0.0
  %v690 = vmax.f32 %v666, 0.0
  %v691 = vmax.f32 %v671, 0.0
  %v692 = vmax.f32 %v674, 0.0
  %v693 = vmax.f32 %v677, %v678
  %v694 = vmax.f32 %v679, %v680
  %v695 = vmax.f32 %v681, %v682
  %v696 = vmax.f32 %v683, %v684
  %v697 = vmax.f32 %v685, %v686
  %v698 = vmax.f32 %v687, %v688
  %v699 = vmax.f32 %v689, %v690
  %v700 = vmax.f32 %v691, %v692
  %v701 = vcombine.low %v693, %v695
  %v702 = vcombine.high %v693, %v695
  %v704 = vunpack.c.l.s4 1983009808
  %v705 = vunpack.c.0.s8 %v704
  %v706 = vlaneseq
  %v707 = vshrl.u32 %v706, 7
  %v708 = vsub.s32 %v705, %v707
  %v709 = vrot.slane %v701, %v708
  %v711 = vunpack.c.l.s4 1983009808
  %v712 = vunpack.c.0.s8 %v711
  %v713 = vlaneseq
  %v714 = vshrl.u32 %v713, 7
  %v715 = vsub.s32 %v712, %v714
  %v716 = vrot.slane %v702, %v715
  %v717 = vcombine.low %v694, %v696
  %v718 = vcombine.high %v694, %v696
  %v720 = vunpack.c.l.s4 1983009808
  %v721 = vunpack.c.0.s8 %v720
  %v722 = vlaneseq
  %v723 = vshrl.u32 %v722, 7
  %v724 = vsub.s32 %v721, %v723
  %v725 = vrot.slane %v717, %v724
  %v727 = vunpack.c.l.s4 1983009808
  %v728 = vunpack.c.0.s8 %v727
  %v729 = vlaneseq
  %v730 = vshrl.u32 %v729, 7
  %v731 = vsub.s32 %v728, %v730
  %v732 = vrot.slane %v718, %v731
  %v733 = vcombine.low %v697, %v699
  %v734 = vcombine.high %v697, %v699
  %v736 = vunpack.c.l.s4 1983009808
  %v737 = vunpack.c.0.s8 %v736
  %v738 = vlaneseq
  %v739 = vshrl.u32 %v738, 7
  %v740 = vsub.s32 %v737, %v739
  %v741 = vrot.slane %v733, %v740
  %v743 = vunpack.c.l.s4 1983009808
  %v744 = vunpack.c.0.s8 %v743
  %v745 = vlaneseq
  %v746 = vshrl.u32 %v745, 7
  %v747 = vsub.s32 %v744, %v746
  %v748 = vrot.slane %v734, %v747
  %v749 = vcombine.low %v698, %v700
  %v750 = vcombine.high %v698, %v700
  %v752 = vunpack.c.l.s4 1983009808
  %v753 = vunpack.c.0.s8 %v752
  %v754 = vlaneseq
  %v755 = vshrl.u32 %v754, 7
  %v756 = vsub.s32 %v753, %v755
  %v757 = vrot.slane %v749, %v756
  %v759 = vunpack.c.l.s4 1983009808
  %v760 = vunpack.c.0.s8 %v759
  %v761 = vlaneseq
  %v762 = vshrl.u32 %v761, 7
  %v763 = vsub.s32 %v760, %v762
  %v764 = vrot.slane %v750, %v763
  %v765 = vcombine.low %v709, %v725
  %v766 = vcombine.high %v709, %v725
  %v768 = vunpack.c.l.s4 1934713408
  %v769 = vunpack.c.0.s8 %v768
  %v770 = vlaneseq
  %v771 = vshrl.u32 %v770, 7
  %v772 = vsub.s32 %v769, %v771
  %v773 = vrot.slane %v765, %v772
  %v775 = vunpack.c.l.s4 1934713408
  %v776 = vunpack.c.0.s8 %v775
  %v777 = vlaneseq
  %v778 = vshrl.u32 %v777, 7
  %v779 = vsub.s32 %v776, %v778
  %v780 = vrot.slane %v766, %v779
  %v781 = vcombine.low %v716, %v732
  %v782 = vcombine.high %v716, %v732
  %v784 = vunpack.c.l.s4 1934713408
  %v785 = vunpack.c.0.s8 %v784
  %v786 = vlaneseq
  %v787 = vshrl.u32 %v786, 7
  %v788 = vsub.s32 %v785, %v787
  %v789 = vrot.slane %v781, %v788
  %v791 = vunpack.c.l.s4 1934713408
  %v792 = vunpack.c.0.s8 %v791
  %v793 = vlaneseq
  %v794 = vshrl.u32 %v793, 7
  %v795 = vsub.s32 %v792, %v794
  %v796 = vrot.slane %v782, %v795
  %v797 = vcombine.low %v741, %v757
  %v798 = vcombine.high %v741, %v757
  %v800 = vunpack.c.l.s4 1934713408
  %v801 = vunpack.c.0.s8 %v800
  %v802 = vlaneseq
  %v803 = vshrl.u32 %v802, 7
  %v804 = vsub.s32 %v801, %v803
  %v805 = vrot.slane %v797, %v804
  %v807 = vunpack.c.l.s4 1934713408
  %v808 = vunpack.c.0.s8 %v807
  %v809 = vlaneseq
  %v810 = vshrl.u32 %v809, 7
  %v811 = vsub.s32 %v808, %v810
  %v812 = vrot.slane %v798, %v811
  %v813 = vcombine.low %v748, %v764
  %v814 = vcombine.high %v748, %v764
  %v816 = vunpack.c.l.s4 1934713408
  %v817 = vunpack.c.0.s8 %v816
  %v818 = vlaneseq
  %v819 = vshrl.u32 %v818, 7
  %v820 = vsub.s32 %v817, %v819
  %v821 = vrot.slane %v813, %v820
  %v823 = vunpack.c.l.s4 1934713408
  %v824 = vunpack.c.0.s8 %v823
  %v825 = vlaneseq
  %v826 = vshrl.u32 %v825, 7
  %v827 = vsub.s32 %v824, %v826
  %v828 = vrot.slane %v814, %v827
  %v829 = vcombine.low %v773, %v805
  %v830 = vcombine.high %v773, %v805
  %v831 = vcombine.low %v780, %v812
  %v832 = vcombine.high %v780, %v812
  %v833 = vcombine.low %v789, %v821
  %v834 = vcombine.high %v789, %v821
  %v835 = vcombine.low %v796, %v828
  %v836 = vcombine.high %v796, %v828
  %838 = vrot.lane.b32.xlu0 %v830, 32
  %v839 = vpop.permute.xlu0 %838
  %842 = vrot.lane.b32.xlu0 %v831, 64
  %v843 = vpop.permute.xlu0 %842
  %846 = vrot.lane.b32.xlu0 %v832, 96
  %v847 = vpop.permute.xlu0 %846
  %850 = vrot.lane.b32.xlu0 %v834, 32
  %v851 = vpop.permute.xlu0 %850
  %854 = vrot.lane.b32.xlu0 %v835, 64
  %v855 = vpop.permute.xlu0 %854
  %858 = vrot.lane.b32.xlu0 %v836, 96
  %v859 = vpop.permute.xlu0 %858
  %vm861 = vcmask 261120
  %v862 = vsel %vm861, %v829, %v839
  %vm863 = vcmask 523264
  %v864 = vsel %vm863, %v862, %v843
  %vm865 = vcmask 785408
  %v866 = vsel %vm865, %v864, %v847
  %v867 = vsel %vm861, %v833, %v851
  %v868 = vsel %vm863, %v867, %v855
  %v869 = vsel %vm865, %v868, %v859
  %v870 = vpack.c.bf16 %v866, %v866
  %v871 = vpack.c.bf16 %v869, %v869
  %v872 = vlaneseq
  %v873 = vshrl.u32 %v872, 7
  %v874 = vsub.s32 4, %v873
  %v875 = vrot.slane %v26, %v874
  %v908 = vunpack.c.l.b16 %v59
  %v909 = vunpack.c.l.b16 %v60
  %v910 = vunpack.c.l.b16 %v61
  %v911 = vunpack.c.l.b16 %v62
  %v912 = vunpack.c.l.b16 %v63
  %v913 = vunpack.c.l.b16 %v64
  %v914 = vunpack.c.l.b16 %v65
  %v915 = vunpack.c.l.b16 %v66
  %v916 = vunpack.c.l.b16 %v67
  %v917 = vunpack.c.l.b16 %v68
  %v918 = vunpack.c.l.b16 %v69
  %v919 = vunpack.c.l.b16 %v70
  %v920 = vunpack.c.l.b16 %v71
  %v921 = vunpack.c.l.b16 %v72
  %v922 = vunpack.c.l.b16 %v73
  %v923 = vunpack.c.l.b16 %v74
  %v924 = vunpack.c.l.b16 %v75
  %v925 = vunpack.c.l.b16 %v76
  %v926 = vunpack.c.l.b16 %v77
  %v927 = vunpack.c.l.b16 %v78
  %v928 = vunpack.c.l.b16 %v79
  %v929 = vunpack.c.l.b16 %v80
  %v930 = vunpack.c.l.b16 %v81
  %v931 = vunpack.c.l.b16 %v82
  %v932 = vunpack.c.l.b16 %v83
  %v933 = vunpack.c.l.b16 %v84
  %v934 = vunpack.c.l.b16 %v85
  %v935 = vunpack.c.l.b16 %v86
  %v936 = vunpack.c.l.b16 %v87
  %v937 = vunpack.c.l.b16 %v88
  %v938 = vunpack.c.l.b16 %v89
  %v939 = vunpack.c.l.b16 %v90
  %v940 = vpack.c.b16 %v909, %v908
  %v941 = vpack.c.b16 %v911, %v910
  %v942 = vpack.c.b16 %v913, %v912
  %v943 = vpack.c.b16 %v915, %v914
  %v944 = vpack.c.b16 %v917, %v916
  %v945 = vpack.c.b16 %v919, %v918
  %v946 = vpack.c.b16 %v921, %v920
  %v947 = vpack.c.b16 %v923, %v922
  %v948 = vpack.c.b16 %v925, %v924
  %v949 = vpack.c.b16 %v927, %v926
  %v950 = vpack.c.b16 %v929, %v928
  %v951 = vpack.c.b16 %v931, %v930
  %v952 = vpack.c.b16 %v933, %v932
  %v953 = vpack.c.b16 %v935, %v934
  %v954 = vpack.c.b16 %v937, %v936
  %v955 = vpack.c.b16 %v939, %v938
  %972 = vmatprep.subr.bf16.mxu0 0
  %973 = vmatpush1.bf16.msra.mxu0 %v947
  %974 = vmatprep.subr.bf16.mxu0 0
  %975 = vmatpush1.bf16.msra.mxu0 %v946
  %976 = vmatprep.subr.bf16.mxu0 0
  %977 = vmatpush1.bf16.msra.mxu0 %v945
  %978 = vmatprep.subr.bf16.mxu0 0
  %979 = vmatpush1.bf16.msra.mxu0 %v944
  %980 = vmatprep.subr.bf16.mxu0 0
  %981 = vmatpush1.bf16.msra.mxu0 %v943
  %982 = vmatprep.subr.bf16.mxu0 0
  %983 = vmatpush1.bf16.msra.mxu0 %v942
  %984 = vmatprep.subr.bf16.mxu0 0
  %985 = vmatpush1.bf16.msra.mxu0 %v941
  %986 = vmatprep.subr.bf16.mxu0 0
  %987 = vmatpush1.bf16.msra.mxu0 %v940
  %988 = vmatprep.subr.bf16.mxu0 0
  %989 = vmatpush2.bf16.msra.mxu0 %v955
  %990 = vmatprep.subr.bf16.mxu0 0
  %991 = vmatpush2.bf16.msra.mxu0 %v954
  %992 = vmatprep.subr.bf16.mxu0 0
  %993 = vmatpush2.bf16.msra.mxu0 %v953
  %994 = vmatprep.subr.bf16.mxu0 0
  %995 = vmatpush2.bf16.msra.mxu0 %v952
  %996 = vmatprep.subr.bf16.mxu0 0
  %997 = vmatpush2.bf16.msra.mxu0 %v951
  %998 = vmatprep.subr.bf16.mxu0 0
  %999 = vmatpush2.bf16.msra.mxu0 %v950
  %1000 = vmatprep.subr.bf16.mxu0 0
  %1001 = vmatpush2.bf16.msra.mxu0 %v949
  %1002 = vmatprep.subr.bf16.mxu0 0
  %1003 = vmatpush2.bf16.msra.mxu0 %v948
  %1004 = vmatprep.mubr.bf16.mxu0 %v871
  %1005 = vmatmul.mubr.bf16.gmra.mxu0 %v870
  %v1006 = vpop.f32.mrf.mxu0
  %v1007 = vadd.f32 %v875, %v1006
  %v1008 = vpop.f32.mrf.mxu0
  %v1009 = vpop.f32.mrf.mxu0
  %v1010 = vpop.f32.mrf.mxu0
  %1011 = vdwg.mxu0
  %1012 = vst [vmem:[%s4] sm:$0xff] %v1007
  // Predicated region
  $region18: #{cnn_forward.1} parent=0 // pred_check
    _
  $region19: #{cnn_forward.1} parent=0 // pred_check_branch
    %1014 = sbr.rel (0) target = $region21
  $region20: #{cnn_forward.1} parent=0 // pred_region
    _
  $region21: #{cnn_forward.1} parent=0 // pred_fallthru
    _
  // Predicated region
  $region22: #{cnn_forward.1} parent=0 // pred_check
    _
  $region23: #{cnn_forward.1} parent=0 // pred_check_branch
    %1016 = sbr.rel (0) target = $region25
  $region24: #{cnn_forward.1} parent=0 // pred_region
    _
  $region25: #{cnn_forward.1} parent=0 // pred_fallthru
    _

</llo_original>
